<compile_context>
chip_gen: v7x
topology: tpu7x:2x2x1
jax: 0.10.0
libtpu: 0.0.40
codegen_flags: <defaults>
</compile_context>

<pallas_src>
import functools

import jax
import jax.numpy as jnp
from jax.experimental import pallas as pl
from jax.experimental.pallas import tpu as pltpu


def _round_up(x, m):
    return ((x + m - 1) // m) * m


def _im2col(x, kh, kw, stride, padding, dilation):
    """Extract conv patches. x: (N, Cin, H, W) -> (M, K), plus (Ho, Wo)."""
    N, Cin, H, W = x.shape
    Ho = (H + 2 * padding - dilation * (kh - 1) - 1) // stride + 1
    Wo = (W + 2 * padding - dilation * (kw - 1) - 1) // stride + 1
    xp = jnp.pad(x, ((0, 0), (0, 0), (padding, padding), (padding, padding)))
    cols = []
    for i in range(kh):
        for j in range(kw):
            patch = xp[:, :,
                       i * dilation: i * dilation + stride * Ho: stride,
                       j * dilation: j * dilation + stride * Wo: stride]
            cols.append(patch)  # (N, Cin, Ho, Wo)
    # (N, Cin, kh*kw, Ho, Wo) -> (N, Ho, Wo, Cin, kh*kw) -> (M, K)
    p = jnp.stack(cols, axis=2)
    p = p.transpose(0, 3, 4, 1, 2).reshape(N * Ho * Wo, Cin * kh * kw)
    return p, Ho, Wo


def _stats_kernel(p_ref, w_ref, stats_ref):
    # p_ref: (tm, Kp) bf16 patch tile.  w_ref: (Kp, Cp) bf16 weights (resident).
    # stats_ref: (2, Cp) f32 output; same block every grid step -> cross-tile accumulator.
    @pl.when(pl.program_id(0) == 0)
    def _():
        stats_ref[...] = jnp.zeros_like(stats_ref)

    y = jnp.dot(p_ref[...], w_ref[...], preferred_element_type=jnp.float32)  # (tm, Cp)
    part = jnp.concatenate(
        [jnp.sum(y, axis=0, keepdims=True),
         jnp.sum(y * y, axis=0, keepdims=True)],
        axis=0)                                                               # (2, Cp)
    stats_ref[...] += part


def _apply_kernel(p_ref, w_ref, scale_ref, shift_ref, o_ref):
    # Recompute the tile matmul, then fused BN (single FMA per element) + ReLU.
    y = jnp.dot(p_ref[...], w_ref[...], preferred_element_type=jnp.float32)  # (tm, Cp)
    o_ref[...] = jnp.maximum(y * scale_ref[...] + shift_ref[...], 0.0).astype(o_ref.dtype)


@functools.partial(jax.jit,
                   static_argnames=("stride", "padding", "dilation", "block_m"))
def basic_conv_forward(x, weight, gamma, beta, *, stride=1, padding=0, dilation=1,
                       block_m=512):
    """BasicConv forward. x: (N, Cin, H, W) NCHW. Returns (N, Cout, Ho, Wo) float32."""
    N, Cin, H, W = x.shape
    Cout, Cin_w, kh, kw = weight.shape
    assert Cin_w == Cin, "groups=1 only"
    eps = 1e-5

    # im2col in bf16 (halves HBM bytes of the patch matrix).
    patches, Ho, Wo = _im2col(x.astype(jnp.bfloat16), kh, kw, stride, padding, dilation)
    M, K = patches.shape

    # Pad to MXU/lane-friendly shapes.
    Kp = _round_up(K, 128)
    Cp = _round_up(Cout, 128)
    tm = _round_up(min(block_m, _round_up(M, 8)), 8)
    Mp = _round_up(M, tm)
    grid_m = Mp // tm

    patches_p = jnp.zeros((Mp, Kp), jnp.bfloat16).at[:M, :K].set(patches)
    w_p = jnp.zeros((Kp, Cp), jnp.bfloat16).at[:K, :Cout].set(
        weight.reshape(Cout, K).T.astype(jnp.bfloat16))
    gamma_p = jnp.zeros((Cp,), jnp.float32).at[:Cout].set(gamma.astype(jnp.float32))
    beta_p = jnp.zeros((Cp,), jnp.float32).at[:Cout].set(beta.astype(jnp.float32))

    vmem_limit = 32 * 1024 * 1024  # safe on v5e/v6e/v7x; plenty for these tiles

    # Pass 1: per-channel sum / sumsq over all M (padded rows are zero -> no effect).
    stats = pl.pallas_call(
        _stats_kernel,
        grid=(grid_m,),
        in_specs=[
            pl.BlockSpec((tm, Kp), lambda i: (i, 0)),
            pl.BlockSpec((Kp, Cp), lambda i: (0, 0)),
        ],
        out_specs=pl.BlockSpec((2, Cp), lambda i: (0, 0)),
        out_shape=jax.ShapeDtypeStruct((2, Cp), jnp.float32),
        compiler_params=pltpu.CompilerParams(
            dimension_semantics=("arbitrary",),   # output block accumulates across M
            vmem_limit_bytes=vmem_limit),
    )(patches_p, w_p)

    # Fold BN into per-channel scale/shift (f32, tiny arrays -> plain XLA).
    mean = stats[0] / M
    var = jnp.maximum(stats[1] / M - mean * mean, 0.0)
    scale = gamma_p * jax.lax.rsqrt(var + eps)          # (Cp,)
    shift = beta_p - mean * scale                       # (Cp,)
    scale = scale.reshape(1, Cp)
    shift = shift.reshape(1, Cp)

    # Pass 2: matmul + single FMA + ReLU, lane-dense (Cp = multiple of 128) stores.
    out_flat = pl.pallas_call(
        _apply_kernel,
        grid=(grid_m,),
        in_specs=[
            pl.BlockSpec((tm, Kp), lambda i: (i, 0)),
            pl.BlockSpec((Kp, Cp), lambda i: (0, 0)),
            pl.BlockSpec((1, Cp), lambda i: (0, 0)),
            pl.BlockSpec((1, Cp), lambda i: (0, 0)),
        ],
        out_specs=pl.BlockSpec((tm, Cp), lambda i: (i, 0)),
        out_shape=jax.ShapeDtypeStruct((Mp, Cp), jnp.float32),
        compiler_params=pltpu.CompilerParams(
            dimension_semantics=("parallel",),    # independent M tiles (megacore on v7x)
            vmem_limit_bytes=vmem_limit),
    )(patches_p, w_p, scale, shift)

    # Slice off padding and relayout to the PyTorch-facing NCHW output.
    out = out_flat[:M, :Cout].reshape(N, Ho, Wo, Cout).transpose(0, 3, 1, 2)
    return out


def _reference(x, weight, gamma, beta, stride, padding, dilation):
    """Plain-JAX f32 reference of the PyTorch forward (train-mode BN)."""
    y = jax.lax.conv_general_dilated(
        x.astype(jnp.float32), weight.astype(jnp.float32),
        window_strides=(stride, stride),
        padding=((padding, padding), (padding, padding)),
        rhs_dilation=(dilation, dilation),
        dimension_numbers=("NCHW", "OIHW", "NCHW"),
        precision=jax.lax.Precision.HIGHEST,
    )
    mean = jnp.mean(y, axis=(0, 2, 3), keepdims=True)
    var = jnp.mean((y - mean) ** 2, axis=(0, 2, 3), keepdims=True)
    y = (y - mean) / jnp.sqrt(var + 1e-5)
    y = y * gamma.reshape(1, -1, 1, 1) + beta.reshape(1, -1, 1, 1)
    return jnp.maximum(y, 0.0)


if __name__ == "__main__":
    # BasicConv(in_planes=4, out_planes=8, kernel_size=3, stride=1, padding=1)
    N, Cin, H, W = 2, 4, 16, 16
    Cout, kh, kw = 8, 3, 3
    stride, padding, dilation = 1, 1, 1

    key = jax.random.PRNGKey(0)
    kx, kw_, kg, kb = jax.random.split(key, 4)
    x = jax.random.normal(kx, (N, Cin, H, W), dtype=jnp.float32)
    weight = jax.random.normal(kw_, (Cout, Cin, kh, kw), dtype=jnp.float32) * 0.1
    gamma = 1.0 + 0.1 * jax.random.normal(kg, (Cout,), dtype=jnp.float32)
    beta = 0.1 * jax.random.normal(kb, (Cout,), dtype=jnp.float32)

    # block_m=128 -> 4 M-tiles on this toy shape, exercising the multi-tile
    # stats accumulation and pipelining paths (default 512 for real sizes).
    out = basic_conv_forward(x, weight, gamma, beta,
                             stride=stride, padding=padding, dilation=dilation,
                             block_m=128)
    out = jax.block_until_ready(out)

    ref = _reference(x, weight, gamma, beta, stride, padding, dilation)
    assert out.shape == (N, Cout, H, W), out.shape
    max_err = float(jnp.max(jnp.abs(out - ref)))
    # bf16 matmul operands (f32 accumulation) vs f32 reference -> relaxed tolerance.
    assert jnp.allclose(out, ref, rtol=2e-2, atol=2e-2), max_err

    print("KERNEL_OK")
</pallas_src>

<mosaic_0001>
module attributes {stable_mosaic.version = 11 : i64} {
  func.func @_apply_kernel(%arg0: i32, %arg1: memref<128x128xbf16, #tpu.memory_space<vmem>>, %arg2: memref<128x128xbf16, #tpu.memory_space<vmem>>, %arg3: memref<1x128xf32, #tpu.memory_space<vmem>>, %arg4: memref<1x128xf32, #tpu.memory_space<vmem>>, %arg5: memref<128x128xf32, #tpu.memory_space<vmem>>) attributes {dimension_semantics = [#tpu.dimension_semantics<parallel>], iteration_bounds = array<i64: 4>, scalar_prefetch = 0 : i64, scratch_operands = 0 : i64, tpu.core_type = #tpu.core_type<tc>, window_params = [{transform_indices = @transform_0, window_bounds = array<i64: 128, 128>}, {pipeline_mode = #tpu.pipeline_mode<synchronous>, transform_indices = @transform_1, window_bounds = array<i64: 128, 128>}, {pipeline_mode = #tpu.pipeline_mode<synchronous>, transform_indices = @transform_2, window_bounds = array<i64: 1, 128>}, {pipeline_mode = #tpu.pipeline_mode<synchronous>, transform_indices = @transform_3, window_bounds = array<i64: 1, 128>}, {transform_indices = @transform_4, window_bounds = array<i64: 128, 128>}]} {
    %c0 = arith.constant 0 : index
    %c0_0 = arith.constant 0 : index
    %0 = vector.load %arg1[%c0, %c0_0] : memref<128x128xbf16, #tpu.memory_space<vmem>>, vector<128x128xbf16>
    %c0_1 = arith.constant 0 : index
    %c0_2 = arith.constant 0 : index
    %1 = vector.load %arg2[%c0_1, %c0_2] : memref<128x128xbf16, #tpu.memory_space<vmem>>, vector<128x128xbf16>
    %cst = arith.constant dense<0.000000e+00> : vector<128x128xf32>
    %2 = tpu.matmul %0, %1, %cst {dimension_numbers = #tpu.dot_dimension_numbers<[1], [0], [0], [1], [0, 0, 1, 1], [], []>} : vector<128x128xbf16>, vector<128x128xbf16>, vector<128x128xf32> -> vector<128x128xf32>
    %c0_3 = arith.constant 0 : index
    %c0_4 = arith.constant 0 : index
    %3 = vector.load %arg3[%c0_3, %c0_4] : memref<1x128xf32, #tpu.memory_space<vmem>>, vector<1x128xf32>
    %4 = vector.broadcast %3 : vector<1x128xf32> to vector<128x128xf32>
    %5 = arith.mulf %2, %4 : vector<128x128xf32>
    %c0_5 = arith.constant 0 : index
    %c0_6 = arith.constant 0 : index
    %6 = vector.load %arg4[%c0_5, %c0_6] : memref<1x128xf32, #tpu.memory_space<vmem>>, vector<1x128xf32>
    %7 = vector.broadcast %6 : vector<1x128xf32> to vector<128x128xf32>
    %8 = arith.addf %5, %7 : vector<128x128xf32>
    %cst_7 = arith.constant 0.000000e+00 : f32
    %9 = vector.broadcast %cst_7 : f32 to vector<128x128xf32>
    %10 = arith.maximumf %8, %9 : vector<128x128xf32>
    %c0_8 = arith.constant 0 : index
    %c0_9 = arith.constant 0 : index
    %11 = vector.load %arg5[%c0_8, %c0_9] : memref<128x128xf32, #tpu.memory_space<vmem>>, vector<128x128xf32>
    tpu.vector_store %arg5[%c0_8, %c0_9], %10 {strides = array<i32>} : memref<128x128xf32, #tpu.memory_space<vmem>>, vector<128x128xf32>,
    return
  }
  func.func @transform_0(%arg0: i32) -> (i32, i32) {
    %c0_i32 = arith.constant 0 : i32
    %c0_i32_0 = arith.constant 0 : i32
    return %arg0, %c0_i32 : i32, i32
  }
  func.func @transform_1(%arg0: i32) -> (i32, i32) {
    %c0_i32 = arith.constant 0 : i32
    %c0_i32_0 = arith.constant 0 : i32
    %c0_i32_1 = arith.constant 0 : i32
    return %c0_i32, %c0_i32_0 : i32, i32
  }
  func.func @transform_2(%arg0: i32) -> (i32, i32) {
    %c0_i32 = arith.constant 0 : i32
    %c0_i32_0 = arith.constant 0 : i32
    %c0_i32_1 = arith.constant 0 : i32
    return %c0_i32, %c0_i32_0 : i32, i32
  }
  func.func @transform_3(%arg0: i32) -> (i32, i32) {
    %c0_i32 = arith.constant 0 : i32
    %c0_i32_0 = arith.constant 0 : i32
    %c0_i32_1 = arith.constant 0 : i32
    return %c0_i32, %c0_i32_0 : i32, i32
  }
  func.func @transform_4(%arg0: i32) -> (i32, i32) {
    %c0_i32 = arith.constant 0 : i32
    %c0_i32_0 = arith.constant 0 : i32
    return %arg0, %c0_i32 : i32, i32
  }
}

module attributes {stable_mosaic.version = 11 : i64} {
  func.func @_stats_kernel(%arg0: i32, %arg1: memref<128x128xbf16, #tpu.memory_space<vmem>>, %arg2: memref<128x128xbf16, #tpu.memory_space<vmem>>, %arg3: memref<2x128xf32, #tpu.memory_space<vmem>>) attributes {dimension_semantics = [#tpu.dimension_semantics<arbitrary>], iteration_bounds = array<i64: 4>, scalar_prefetch = 0 : i64, scratch_operands = 0 : i64, tpu.core_type = #tpu.core_type<tc>, window_params = [{transform_indices = @transform_0, window_bounds = array<i64: 128, 128>}, {pipeline_mode = #tpu.pipeline_mode<synchronous>, transform_indices = @transform_1, window_bounds = array<i64: 128, 128>}, {pipeline_mode = #tpu.pipeline_mode<synchronous>, transform_indices = @transform_2, window_bounds = array<i64: 2, 128>}]} {
    %c0_i32 = arith.constant 0 : i32
    %0 = arith.cmpi eq, %arg0, %c0_i32 : i32
    %1 = arith.extui %0 : i1 to i32
    %c0_i32_0 = arith.constant 0 : i32
    %2 = arith.cmpi ne, %1, %c0_i32_0 : i32
    scf.if %2 {
      %cst_10 = arith.constant 0.000000e+00 : f32
      %15 = vector.broadcast %cst_10 : f32 to vector<2x128xf32>
      %c0_11 = arith.constant 0 : index
      %c0_12 = arith.constant 0 : index
      %16 = vector.load %arg3[%c0_11, %c0_12] : memref<2x128xf32, #tpu.memory_space<vmem>>, vector<2x128xf32>
      tpu.vector_store %arg3[%c0_11, %c0_12], %15 {strides = array<i32>} : memref<2x128xf32, #tpu.memory_space<vmem>>, vector<2x128xf32>,
    } else {
    }
    %c0 = arith.constant 0 : index
    %c0_1 = arith.constant 0 : index
    %3 = vector.load %arg1[%c0, %c0_1] : memref<128x128xbf16, #tpu.memory_space<vmem>>, vector<128x128xbf16>
    %c0_2 = arith.constant 0 : index
    %c0_3 = arith.constant 0 : index
    %4 = vector.load %arg2[%c0_2, %c0_3] : memref<128x128xbf16, #tpu.memory_space<vmem>>, vector<128x128xbf16>
    %cst = arith.constant dense<0.000000e+00> : vector<128x128xf32>
    %5 = tpu.matmul %3, %4, %cst {dimension_numbers = #tpu.dot_dimension_numbers<[1], [0], [0], [1], [0, 0, 1, 1], [], []>} : vector<128x128xbf16>, vector<128x128xbf16>, vector<128x128xf32> -> vector<128x128xf32>
    %cst_4 = arith.constant dense<0.000000e+00> : vector<128xf32>
    %6 = vector.multi_reduction <add>, %5, %cst_4 [0] : vector<128x128xf32> to vector<128xf32>
    %7 = vector.shape_cast %6 : vector<128xf32> to vector<1x128xf32>
    %8 = arith.mulf %5, %5 : vector<128x128xf32>
    %cst_5 = arith.constant dense<0.000000e+00> : vector<128xf32>
    %9 = vector.multi_reduction <add>, %8, %cst_5 [0] : vector<128x128xf32> to vector<128xf32>
    %10 = vector.shape_cast %9 : vector<128xf32> to vector<1x128xf32>
    %11 = tpu.concatenate %7, %10 in 0 : vector<1x128xf32>, vector<1x128xf32> -> vector<2x128xf32>
    %c0_6 = arith.constant 0 : index
    %c0_7 = arith.constant 0 : index
    %12 = vector.load %arg3[%c0_6, %c0_7] : memref<2x128xf32, #tpu.memory_space<vmem>>, vector<2x128xf32>
    %13 = arith.addf %12, %11 : vector<2x128xf32>
    %c0_8 = arith.constant 0 : index
    %c0_9 = arith.constant 0 : index
    %14 = vector.load %arg3[%c0_8, %c0_9] : memref<2x128xf32, #tpu.memory_space<vmem>>, vector<2x128xf32>
    tpu.vector_store %arg3[%c0_8, %c0_9], %13 {strides = array<i32>} : memref<2x128xf32, #tpu.memory_space<vmem>>, vector<2x128xf32>,
    return
  }
  func.func @transform_0(%arg0: i32) -> (i32, i32) {
    %c0_i32 = arith.constant 0 : i32
    %c0_i32_0 = arith.constant 0 : i32
    return %arg0, %c0_i32 : i32, i32
  }
  func.func @transform_1(%arg0: i32) -> (i32, i32) {
    %c0_i32 = arith.constant 0 : i32
    %c0_i32_0 = arith.constant 0 : i32
    %c0_i32_1 = arith.constant 0 : i32
    return %c0_i32, %c0_i32_0 : i32, i32
  }
  func.func @transform_2(%arg0: i32) -> (i32, i32) {
    %c0_i32 = arith.constant 0 : i32
    %c0_i32_0 = arith.constant 0 : i32
    %c0_i32_1 = arith.constant 0 : i32
    return %c0_i32, %c0_i32_0 : i32, i32
  }
}

</mosaic_0001>

<llo_original>
// kernel: basic_conv_forward.3
$region0: #{basic_conv_forward.3}
  #allocation0 [shape = 'u32[]', space=smem, size = 0x4, offset = 0x4, fixed_abs, tag = 'smem constant byte address 0x4 - core index']
  #allocation1 [shape = 'u32[144,128]{1,0:T(1,128)}', space=vmem, size = 0x12000, scoped, tag = 'internal scratch']
  %s0 = inlined_call_operand.vmem [shape: bf16[512,128], index: 0, kind: input, shape index: {}]
  %s1 = inlined_call_operand.vmem [shape: bf16[128,128], index: 1, kind: input, shape index: {}]
  %s2 = inlined_call_operand.vmem [shape: f32[1,128], index: 2, kind: input, shape index: {}]
  %s3 = inlined_call_operand.vmem [shape: f32[1,128], index: 3, kind: input, shape index: {}]
  %s4 = inlined_call_operand.vmem [shape: f32[512,128], index: 4, kind: output, shape index: {}]
  %s5 = sld [smem:[#allocation0]]
  $region49: #{basic_conv_forward.3} parent=0
    _
  %s7 = ssub.s32 1, %s5
  %s8 = scalar_select 0, %s7, %s5
  loop: start=0, step=1, limit=6
  $region2: #{basic_conv_forward.3} parent=0 // loop_pre_header
    _
  $region3: #{basic_conv_forward.3} parent=0 // loop_header
    %s10 = sphi 0, %s14
    %p11 = scmp.ge.s32.totalorder %s10, 6
    %s20 = sphi 0, %s22
    %s23 = sphi 0, %s20
    %s24 = sphi 0, %s23
    %s40 = sphi 0, %s24
    %s44 = sphi 0, %s44
    %s46 = sphi 0, %s44
    %s47 = sphi 0, %s46
    %s61 = sphi 0, %s47
    %s65 = sphi 0, %s65
    %s67 = sphi 0, %s65
    %s68 = sphi 0, %s67
    %s82 = sphi 0, %s68
    %s86 = sphi 0, %s86
    %s88 = sphi 0, %s86
    %s89 = sphi 0, %s88
    %s103 = sphi 0, %s89
    %s109 = sphi 0, %s111
    %s112 = sphi 0, %s109
    %s113 = sphi 0, %s112
    %s129 = sphi 0, %s113
  $region4: #{basic_conv_forward.3} parent=0 // loop_header_branch
    %13 = sbr.rel (%p11) target = $region8
  $region5: #{basic_conv_forward.3} parent=0 // loop_body
    %s15 = ssub.s32 %s10, 1
    %s16 = ssub.s32 %s10, 2
    %s17 = sadd.s32 %s10, 1
    %s18 = ssub.s32 %s10, %s17
    %p19 = scmp.eq.s32.totalorder %s18, 0
    %s21 = sadd.s32 %s20, 1
    %s22 = scalar_select %p19, %s20, %s21
    %p25 = pneg %p19
    %p26 = scmp.eq.s32.totalorder %s10, 3
    %p27 = por %p25, %p26
    %p28 = scmp.ne.s32.totalorder %s20, %s23
    %p29 = scmp.eq.s32.totalorder %s10, 0
    %p30 = por %p28, %p29
    %p31 = scmp.ne.s32.totalorder %s20, %s23
    %p32 = scmp.eq.s32.totalorder %s15, 3
    %p33 = por %p31, %p32
    %p34 = scmp.ne.s32.totalorder %s23, %s24
    %p35 = scmp.eq.s32.totalorder %s15, 0
    %p36 = por %p34, %p35
    %p37 = scmp.ne.s32.totalorder %s23, %s24
    %p38 = scmp.eq.s32.totalorder %s16, 3
    %p39 = por %p37, %p38
    %p41 = scmp.ne.s32.totalorder %s24, %s40
    %p42 = scmp.eq.s32.totalorder %s16, 0
    %p43 = por %p41, %p42
    %s45 = sadd.s32 %s44, 1
    %p48 = scmp.eq.s32.totalorder %s10, 3
    %p49 = scmp.ne.s32.totalorder %s44, %s46
    %p50 = scmp.eq.s32.totalorder %s10, 0
    %p51 = por %p49, %p50
    %p52 = scmp.ne.s32.totalorder %s44, %s46
    %p53 = scmp.eq.s32.totalorder %s15, 3
    %p54 = por %p52, %p53
    %p55 = scmp.ne.s32.totalorder %s46, %s47
    %p56 = scmp.eq.s32.totalorder %s15, 0
    %p57 = por %p55, %p56
    %p58 = scmp.ne.s32.totalorder %s46, %s47
    %p59 = scmp.eq.s32.totalorder %s16, 3
    %p60 = por %p58, %p59
    %p62 = scmp.ne.s32.totalorder %s47, %s61
    %p63 = scmp.eq.s32.totalorder %s16, 0
    %p64 = por %p62, %p63
    %s66 = sadd.s32 %s65, 1
    %p69 = scmp.eq.s32.totalorder %s10, 3
    %p70 = scmp.ne.s32.totalorder %s65, %s67
    %p71 = scmp.eq.s32.totalorder %s10, 0
    %p72 = por %p70, %p71
    %p73 = scmp.ne.s32.totalorder %s65, %s67
    %p74 = scmp.eq.s32.totalorder %s15, 3
    %p75 = por %p73, %p74
    %p76 = scmp.ne.s32.totalorder %s67, %s68
    %p77 = scmp.eq.s32.totalorder %s15, 0
    %p78 = por %p76, %p77
    %p79 = scmp.ne.s32.totalorder %s67, %s68
    %p80 = scmp.eq.s32.totalorder %s16, 3
    %p81 = por %p79, %p80
    %p83 = scmp.ne.s32.totalorder %s68, %s82
    %p84 = scmp.eq.s32.totalorder %s16, 0
    %p85 = por %p83, %p84
    %s87 = sadd.s32 %s86, 1
    %p90 = scmp.eq.s32.totalorder %s10, 3
    %p91 = scmp.ne.s32.totalorder %s86, %s88
    %p92 = scmp.eq.s32.totalorder %s10, 0
    %p93 = por %p91, %p92
    %p94 = scmp.ne.s32.totalorder %s86, %s88
    %p95 = scmp.eq.s32.totalorder %s15, 3
    %p96 = por %p94, %p95
    %p97 = scmp.ne.s32.totalorder %s88, %s89
    %p98 = scmp.eq.s32.totalorder %s15, 0
    %p99 = por %p97, %p98
    %p100 = scmp.ne.s32.totalorder %s88, %s89
    %p101 = scmp.eq.s32.totalorder %s16, 3
    %p102 = por %p100, %p101
    %p104 = scmp.ne.s32.totalorder %s89, %s103
    %p105 = scmp.eq.s32.totalorder %s16, 0
    %p106 = por %p104, %p105
    %s107 = ssub.s32 %s10, %s17
    %p108 = scmp.eq.s32.totalorder %s107, 0
    %s110 = sadd.s32 %s109, 1
    %s111 = scalar_select %p108, %s109, %s110
    %p114 = pneg %p108
    %p115 = scmp.eq.s32.totalorder %s10, 3
    %p116 = por %p114, %p115
    %p117 = scmp.ne.s32.totalorder %s109, %s112
    %p118 = scmp.eq.s32.totalorder %s10, 0
    %p119 = por %p117, %p118
    %p120 = scmp.ne.s32.totalorder %s109, %s112
    %p121 = scmp.eq.s32.totalorder %s15, 3
    %p122 = por %p120, %p121
    %p123 = scmp.ne.s32.totalorder %s112, %s113
    %p124 = scmp.eq.s32.totalorder %s15, 0
    %p125 = por %p123, %p124
    %p126 = scmp.ne.s32.totalorder %s112, %s113
    %p127 = scmp.eq.s32.totalorder %s16, 3
    %p128 = por %p126, %p127
    %p130 = scmp.ne.s32.totalorder %s113, %s129
    %p131 = scmp.eq.s32.totalorder %s16, 0
    %p132 = por %p130, %p131
    %p133 = scmp.le.s32.totalorder 1, %s10
    %p134 = scmp.lt.s32.totalorder %s10, 5
    %p135 = pnand %p133, %p134
    %p136 = pneg %p135
    // Predicated region
    $region9: #{basic_conv_forward.3} parent=5 // pred_check
      _
    $region10: #{basic_conv_forward.3} parent=5 // pred_check_branch
      %138 = sbr.rel (%p135) target = $region12
    $region11: #{basic_conv_forward.3} parent=5 // pred_region
      %s139 = ssub.s32 %s10, 1
      // Predicated region
      $region13: #{basic_conv_forward.3} parent=11 // pred_check
        %p140 = pneg %p57
      $region14: #{basic_conv_forward.3} parent=11 // pred_check_branch
        %142 = sbr.rel (%p140) target = $region16
      $region15: #{basic_conv_forward.3} parent=11 // pred_region
        _
      $region16: #{basic_conv_forward.3} parent=11 // pred_fallthru
        _
      // Predicated region
      $region17: #{basic_conv_forward.3} parent=11 // pred_check
        %p143 = pneg %p78
      $region18: #{basic_conv_forward.3} parent=11 // pred_check_branch
        %145 = sbr.rel (%p143) target = $region20
      $region19: #{basic_conv_forward.3} parent=11 // pred_region
        _
      $region20: #{basic_conv_forward.3} parent=11 // pred_fallthru
        _
      // Predicated region
      $region21: #{basic_conv_forward.3} parent=11 // pred_check
        %p146 = pneg %p99
      $region22: #{basic_conv_forward.3} parent=11 // pred_check_branch
        %148 = sbr.rel (%p146) target = $region24
      $region23: #{basic_conv_forward.3} parent=11 // pred_region
        _
      $region24: #{basic_conv_forward.3} parent=11 // pred_fallthru
        _
    $region12: #{basic_conv_forward.3} parent=5 // pred_fallthru
      _
    %p149 = scmp.lt.s32.totalorder %s10, 4
    // Predicated region
    $region25: #{basic_conv_forward.3} parent=5 // pred_check
      %p150 = pneg %p149
    $region26: #{basic_conv_forward.3} parent=5 // pred_check_branch
      %152 = sbr.rel (%p150) target = $region28
    $region27: #{basic_conv_forward.3} parent=5 // pred_region
      // Predicated region
      $region29: #{basic_conv_forward.3} parent=27 // pred_check
        %p153 = pneg %p30
      $region30: #{basic_conv_forward.3} parent=27 // pred_check_branch
        %155 = sbr.rel (%p153) target = $region32
      $region31: #{basic_conv_forward.3} parent=27 // pred_region
        %s156 = smul.u32 16, %s10
        %p157 = scmp.lt.s32.totalorder %s156, 63
        %s158 = scalar_select %p157, %s156, 63
        %s159 = smul.addr %s158, 4
        %s160 = scalar_lea.vmem %s0, %s159
        %s161 = smul.u32 16, %s10
      $region32: #{basic_conv_forward.3} parent=27 // pred_fallthru
        _
    $region28: #{basic_conv_forward.3} parent=5 // pred_fallthru
      _
    %p162 = scmp.le.s32.totalorder 1, %s10
    %p163 = scmp.lt.s32.totalorder %s10, 5
    %p164 = pnand %p162, %p163
    %p165 = pneg %p164
    // Predicated region
    $region33: #{basic_conv_forward.3} parent=5 // pred_check
      _
    $region34: #{basic_conv_forward.3} parent=5 // pred_check_branch
      %167 = sbr.rel (%p164) target = $region36
    $region35: #{basic_conv_forward.3} parent=5 // pred_region
      %s168 = ssub.s32 %s10, 1
      %s169 = smul.u32 16, %s15
      %p170 = scmp.lt.s32.totalorder %s169, 63
      %s171 = scalar_select %p170, %s169, 63
      %s172 = smul.addr %s171, 4
      %s173 = scalar_lea.vmem %s0, %s172
      %p174 = pneg %p36
      %p175 = pneg %p33
      %p176 = pneg %p57
      %p177 = pneg %p54
      %p178 = pneg %p78
      %p179 = pneg %p75
      %p180 = pneg %p99
      %p181 = pneg %p96
      %p182 = pneg %p125
      %p183 = pneg %p122
      %s184 = smul.u32 16, %s15
      %p185 = scmp.lt.s32.totalorder %s184, 63
      %s186 = scalar_select %p185, %s184, 63
      %s187 = smul.addr %s186, 8
      %s188 = scalar_lea.vmem %s4, %s187
      %s189 = smul.u32 16, %s15
      %p190 = scmp.lt.s32.totalorder %s189, 63
      %s191 = scalar_select %p190, %s189, 63
      %s192 = smul.addr %s191, 4
      %s193 = scalar_lea.vmem %s0, %s192
      %s194 = smul.u32 16, %s15
      %s195 = smul.u32 16, %s15
      %p196 = scmp.lt.s32.totalorder %s195, 63
      %s197 = scalar_select %p196, %s195, 63
      %s198 = smul.addr %s197, 8
      %s199 = scalar_lea.vmem %s4, %s198
      %s200 = smul.u32 16, %s15
      %v202 = vld [vmem:[%s193] sm:$0xf]
      %v203 = vld [vmem:[%s193 + $0x4] sm:$0xf]
      %v204 = vld [vmem:[%s193 + $0x8] sm:$0xf]
      %v205 = vld [vmem:[%s193 + $0xc] sm:$0xf]
      %v206 = vld [vmem:[%s193 + $0x10] sm:$0xf]
      %v207 = vld [vmem:[%s193 + $0x14] sm:$0xf]
      %v208 = vld [vmem:[%s193 + $0x18] sm:$0xf]
      %v209 = vld [vmem:[%s193 + $0x1c] sm:$0xf]
      %v210 = vld [vmem:[%s193 + $0x20] sm:$0xf]
      %v211 = vld [vmem:[%s193 + $0x24] sm:$0xf]
      %v212 = vld [vmem:[%s193 + $0x28] sm:$0xf]
      %v213 = vld [vmem:[%s193 + $0x2c] sm:$0xf]
      %v214 = vld [vmem:[%s193 + $0x30] sm:$0xf]
      %v215 = vld [vmem:[%s193 + $0x34] sm:$0xf]
      %v216 = vld [vmem:[%s193 + $0x38] sm:$0xf]
      %v217 = vld [vmem:[%s193 + $0x3c] sm:$0xf]
      %v218 = vld [vmem:[%s1] sm:$0xf]
      %v219 = vld [vmem:[%s1 + $0x4] sm:$0xf]
      %v220 = vld [vmem:[%s1 + $0x8] sm:$0xf]
      %v221 = vld [vmem:[%s1 + $0xc] sm:$0xf]
      %v222 = vld [vmem:[%s1 + $0x10] sm:$0xf]
      %v223 = vld [vmem:[%s1 + $0x14] sm:$0xf]
      %v224 = vld [vmem:[%s1 + $0x18] sm:$0xf]
      %v225 = vld [vmem:[%s1 + $0x1c] sm:$0xf]
      %v226 = vld [vmem:[%s1 + $0x20] sm:$0xf]
      %v227 = vld [vmem:[%s1 + $0x24] sm:$0xf]
      %v228 = vld [vmem:[%s1 + $0x28] sm:$0xf]
      %v229 = vld [vmem:[%s1 + $0x2c] sm:$0xf]
      %v230 = vld [vmem:[%s1 + $0x30] sm:$0xf]
      %v231 = vld [vmem:[%s1 + $0x34] sm:$0xf]
      %v232 = vld [vmem:[%s1 + $0x38] sm:$0xf]
      %v233 = vld [vmem:[%s1 + $0x3c] sm:$0xf]
      %v250 = vunpack.c.l.b16 %v202
      %v251 = vunpack.c.l.b16 %v203
      %v252 = vunpack.c.l.b16 %v204
      %v253 = vunpack.c.l.b16 %v205
      %v254 = vunpack.c.l.b16 %v206
      %v255 = vunpack.c.l.b16 %v207
      %v256 = vunpack.c.l.b16 %v208
      %v257 = vunpack.c.l.b16 %v209
      %v258 = vunpack.c.l.b16 %v210
      %v259 = vunpack.c.l.b16 %v211
      %v260 = vunpack.c.l.b16 %v212
      %v261 = vunpack.c.l.b16 %v213
      %v262 = vunpack.c.l.b16 %v214
      %v263 = vunpack.c.l.b16 %v215
      %v264 = vunpack.c.l.b16 %v216
      %v265 = vunpack.c.l.b16 %v217
      %v266 = vpack.c.b16 %v251, %v250
      %v267 = vpack.c.b16 %v253, %v252
      %v268 = vpack.c.b16 %v255, %v254
      %v269 = vpack.c.b16 %v257, %v256
      %v270 = vpack.c.b16 %v259, %v258
      %v271 = vpack.c.b16 %v261, %v260
      %v272 = vpack.c.b16 %v263, %v262
      %v273 = vpack.c.b16 %v265, %v264
      %v298 = vunpack.c.l.b16 %v218
      %v299 = vunpack.c.l.b16 %v219
      %v300 = vunpack.c.l.b16 %v220
      %v301 = vunpack.c.l.b16 %v221
      %v302 = vunpack.c.l.b16 %v222
      %v303 = vunpack.c.l.b16 %v223
      %v304 = vunpack.c.l.b16 %v224
      %v305 = vunpack.c.l.b16 %v225
      %v306 = vunpack.c.l.b16 %v226
      %v307 = vunpack.c.l.b16 %v227
      %v308 = vunpack.c.l.b16 %v228
      %v309 = vunpack.c.l.b16 %v229
      %v310 = vunpack.c.l.b16 %v230
      %v311 = vunpack.c.l.b16 %v231
      %v312 = vunpack.c.l.b16 %v232
      %v313 = vunpack.c.l.b16 %v233
      %v314 = vpack.c.b16 %v299, %v298
      %v315 = vpack.c.b16 %v301, %v300
      %v316 = vpack.c.b16 %v303, %v302
      %v317 = vpack.c.b16 %v305, %v304
      %v318 = vpack.c.b16 %v307, %v306
      %v319 = vpack.c.b16 %v309, %v308
      %v320 = vpack.c.b16 %v311, %v310
      %v321 = vpack.c.b16 %v313, %v312
      %330 = vmatprep.subr.bf16.mxu0 0
      %331 = vmatpush1.bf16.msra.mxu0 %v314
      %332 = vmatprep.subr.bf16.mxu0 0
      %333 = vmatpush1.bf16.msra.mxu0 %v315
      %334 = vmatprep.subr.bf16.mxu0 0
      %335 = vmatpush1.bf16.msra.mxu0 %v316
      %336 = vmatprep.subr.bf16.mxu0 0
      %337 = vmatpush1.bf16.msra.mxu0 %v317
      %338 = vmatprep.subr.bf16.mxu0 0
      %339 = vmatpush1.bf16.msra.mxu0 %v318
      %340 = vmatprep.subr.bf16.mxu0 0
      %341 = vmatpush1.bf16.msra.mxu0 %v319
      %342 = vmatprep.subr.bf16.mxu0 0
      %343 = vmatpush1.bf16.msra.mxu0 %v320
      %344 = vmatprep.subr.bf16.mxu0 0
      %345 = vmatpush1.bf16.msra.mxu0 %v321
      %346 = vmatprep.subr.bf16.mxu0 0
      %347 = vmatpush1.bf16.msra.mxu0 0
      %348 = vmatprep.subr.bf16.mxu0 0
      %349 = vmatpush1.bf16.msra.mxu0 0
      %350 = vmatprep.subr.bf16.mxu0 0
      %351 = vmatpush1.bf16.msra.mxu0 0
      %352 = vmatprep.subr.bf16.mxu0 0
      %353 = vmatpush1.bf16.msra.mxu0 0
      %354 = vmatprep.subr.bf16.mxu0 0
      %355 = vmatpush1.bf16.msra.mxu0 0
      %356 = vmatprep.subr.bf16.mxu0 0
      %357 = vmatpush1.bf16.msra.mxu0 0
      %358 = vmatprep.subr.bf16.mxu0 0
      %359 = vmatpush1.bf16.msra.mxu0 0
      %360 = vmatprep.subr.bf16.mxu0 0
      %361 = vmatpush1.bf16.msra.mxu0 0
      %362 = vmatprep.mubr.bf16.mxu0 0
      %363 = vmatmul.mubr.bf16.gmra.mrb[0].mxu0 %v266
      %v364 = vpop.f32.mrb[0].mxu0
      %v365 = vadd.f32 0.0, %v364
      %v366 = vpop.f32.mrb[0].mxu0
      %v367 = vpop.f32.mrb[0].mxu0
      %v368 = vadd.f32 0.0, %v367
      %v369 = vpop.f32.mrb[0].mxu0
      %370 = vmatprep.mubr.bf16.mxu0 0
      %371 = vmatmul.mubr.bf16.gmra.mrb[0].mxu0 %v267
      %v372 = vpop.f32.mrb[0].mxu0
      %v373 = vadd.f32 0.0, %v372
      %v374 = vpop.f32.mrb[0].mxu0
      %v375 = vpop.f32.mrb[0].mxu0
      %v376 = vadd.f32 0.0, %v375
      %v377 = vpop.f32.mrb[0].mxu0
      %378 = vmatprep.mubr.bf16.mxu0 0
      %379 = vmatmul.mubr.bf16.gmra.mrb[0].mxu0 %v268
      %v380 = vpop.f32.mrb[0].mxu0
      %v381 = vadd.f32 0.0, %v380
      %v382 = vpop.f32.mrb[0].mxu0
      %v383 = vpop.f32.mrb[0].mxu0
      %v384 = vadd.f32 0.0, %v383
      %v385 = vpop.f32.mrb[0].mxu0
      %386 = vmatprep.mubr.bf16.mxu0 0
      %387 = vmatmul.mubr.bf16.gmra.mrb[0].mxu0 %v269
      %v388 = vpop.f32.mrb[0].mxu0
      %v389 = vadd.f32 0.0, %v388
      %v390 = vpop.f32.mrb[0].mxu0
      %v391 = vpop.f32.mrb[0].mxu0
      %v392 = vadd.f32 0.0, %v391
      %v393 = vpop.f32.mrb[0].mxu0
      %394 = vmatprep.mubr.bf16.mxu0 0
      %395 = vmatmul.mubr.bf16.gmra.mrb[0].mxu0 %v270
      %v396 = vpop.f32.mrb[0].mxu0
      %v397 = vadd.f32 0.0, %v396
      %v398 = vpop.f32.mrb[0].mxu0
      %v399 = vpop.f32.mrb[0].mxu0
      %v400 = vadd.f32 0.0, %v399
      %v401 = vpop.f32.mrb[0].mxu0
      %402 = vmatprep.mubr.bf16.mxu0 0
      %403 = vmatmul.mubr.bf16.gmra.mrb[0].mxu0 %v271
      %v404 = vpop.f32.mrb[0].mxu0
      %v405 = vadd.f32 0.0, %v404
      %v406 = vpop.f32.mrb[0].mxu0
      %v407 = vpop.f32.mrb[0].mxu0
      %v408 = vadd.f32 0.0, %v407
      %v409 = vpop.f32.mrb[0].mxu0
      %410 = vmatprep.mubr.bf16.mxu0 0
      %411 = vmatmul.mubr.bf16.gmra.mrb[0].mxu0 %v272
      %v412 = vpop.f32.mrb[0].mxu0
      %v413 = vadd.f32 0.0, %v412
      %v414 = vpop.f32.mrb[0].mxu0
      %v415 = vpop.f32.mrb[0].mxu0
      %v416 = vadd.f32 0.0, %v415
      %v417 = vpop.f32.mrb[0].mxu0
      %418 = vmatprep.mubr.bf16.mxu0 0
      %419 = vmatmul.mubr.bf16.gmra.mrb[0].mxu0 %v273
      %v420 = vpop.f32.mrb[0].mxu0
      %v421 = vadd.f32 0.0, %v420
      %v422 = vpop.f32.mrb[0].mxu0
      %v423 = vpop.f32.mrb[0].mxu0
      %v424 = vadd.f32 0.0, %v423
      %v425 = vpop.f32.mrb[0].mxu0
      %426 = vdwg.mxu0
      %v427 = vld [vmem:[%s2] sm:$0x1]
      %v429 = vlaneseq
      %v430 = vshrl.u32 %v429, 7
      %v431 = vsub.s32 0, %v430
      %v432 = vrot.slane %v427, %v431
      %v434 = vmul.f32 %v365, %v432
      %v435 = vmul.f32 %v368, %v432
      %v436 = vmul.f32 %v373, %v432
      %v437 = vmul.f32 %v376, %v432
      %v438 = vmul.f32 %v381, %v432
      %v439 = vmul.f32 %v384, %v432
      %v440 = vmul.f32 %v389, %v432
      %v441 = vmul.f32 %v392, %v432
      %v442 = vmul.f32 %v397, %v432
      %v443 = vmul.f32 %v400, %v432
      %v444 = vmul.f32 %v405, %v432
      %v445 = vmul.f32 %v408, %v432
      %v446 = vmul.f32 %v413, %v432
      %v447 = vmul.f32 %v416, %v432
      %v448 = vmul.f32 %v421, %v432
      %v449 = vmul.f32 %v424, %v432
      %v450 = vld [vmem:[%s3] sm:$0x1]
      %v452 = vlaneseq
      %v453 = vshrl.u32 %v452, 7
      %v454 = vsub.s32 0, %v453
      %v455 = vrot.slane %v450, %v454
      %v457 = vadd.f32 %v434, %v455
      %v458 = vadd.f32 %v435, %v455
      %v459 = vadd.f32 %v436, %v455
      %v460 = vadd.f32 %v437, %v455
      %v461 = vadd.f32 %v438, %v455
      %v462 = vadd.f32 %v439, %v455
      %v463 = vadd.f32 %v440, %v455
      %v464 = vadd.f32 %v441, %v455
      %v465 = vadd.f32 %v442, %v455
      %v466 = vadd.f32 %v443, %v455
      %v467 = vadd.f32 %v444, %v455
      %v468 = vadd.f32 %v445, %v455
      %v469 = vadd.f32 %v446, %v455
      %v470 = vadd.f32 %v447, %v455
      %v471 = vadd.f32 %v448, %v455
      %v472 = vadd.f32 %v449, %v455
      %v473 = vmax.f32 %v457, 0.0
      %v474 = vmax.f32 %v458, 0.0
      %v475 = vmax.f32 %v459, 0.0
      %v476 = vmax.f32 %v460, 0.0
      %v477 = vmax.f32 %v461, 0.0
      %v478 = vmax.f32 %v462, 0.0
      %v479 = vmax.f32 %v463, 0.0
      %v480 = vmax.f32 %v464, 0.0
      %v481 = vmax.f32 %v465, 0.0
      %v482 = vmax.f32 %v466, 0.0
      %v483 = vmax.f32 %v467, 0.0
      %v484 = vmax.f32 %v468, 0.0
      %v485 = vmax.f32 %v469, 0.0
      %v486 = vmax.f32 %v470, 0.0
      %v487 = vmax.f32 %v471, 0.0
      %v488 = vmax.f32 %v472, 0.0
      %489 = vst [vmem:[%s199] sm:$0xff] %v473
      %490 = vst [vmem:[%s199 + $0x8] sm:$0xff] %v474
      %491 = vst [vmem:[%s199 + $0x10] sm:$0xff] %v475
      %492 = vst [vmem:[%s199 + $0x18] sm:$0xff] %v476
      %493 = vst [vmem:[%s199 + $0x20] sm:$0xff] %v477
      %494 = vst [vmem:[%s199 + $0x28] sm:$0xff] %v478
      %495 = vst [vmem:[%s199 + $0x30] sm:$0xff] %v479
      %496 = vst [vmem:[%s199 + $0x38] sm:$0xff] %v480
      %497 = vst [vmem:[%s199 + $0x40] sm:$0xff] %v481
      %498 = vst [vmem:[%s199 + $0x48] sm:$0xff] %v482
      %499 = vst [vmem:[%s199 + $0x50] sm:$0xff] %v483
      %500 = vst [vmem:[%s199 + $0x58] sm:$0xff] %v484
      %501 = vst [vmem:[%s199 + $0x60] sm:$0xff] %v485
      %502 = vst [vmem:[%s199 + $0x68] sm:$0xff] %v486
      %503 = vst [vmem:[%s199 + $0x70] sm:$0xff] %v487
      %504 = vst [vmem:[%s199 + $0x78] sm:$0xff] %v488
      %s505 = smul.u32 16, %s15
      %p506 = scmp.lt.s32.totalorder %s505, 63
      %s507 = scalar_select %p506, %s505, 63
      %s508 = smul.addr %s507, 8
      %s509 = scalar_lea.vmem %s4, %s508
      // Predicated region
      $region37: #{basic_conv_forward.3} parent=35 // pred_check
        %p510 = pneg %p122
      $region38: #{basic_conv_forward.3} parent=35 // pred_check_branch
        %512 = sbr.rel (%p510) target = $region40
      $region39: #{basic_conv_forward.3} parent=35 // pred_region
        %s513 = smul.u32 16, %s15
      $region40: #{basic_conv_forward.3} parent=35 // pred_fallthru
        _
    $region36: #{basic_conv_forward.3} parent=5 // pred_fallthru
      _
    %p514 = scmp.le.s32.totalorder 2, %s10
    // Predicated region
    $region41: #{basic_conv_forward.3} parent=5 // pred_check
      %p515 = pneg %p514
    $region42: #{basic_conv_forward.3} parent=5 // pred_check_branch
      %517 = sbr.rel (%p515) target = $region44
    $region43: #{basic_conv_forward.3} parent=5 // pred_region
      %s518 = ssub.s32 %s10, 2
      // Predicated region
      $region45: #{basic_conv_forward.3} parent=43 // pred_check
        %p519 = pneg %p128
      $region46: #{basic_conv_forward.3} parent=43 // pred_check_branch
        %521 = sbr.rel (%p519) target = $region48
      $region47: #{basic_conv_forward.3} parent=43 // pred_region
        %s522 = smul.u32 16, %s16
        %p523 = scmp.lt.s32.totalorder %s522, 63
        %s524 = scalar_select %p523, %s522, 63
        %s525 = smul.addr %s524, 8
        %s526 = scalar_lea.vmem %s4, %s525
      $region48: #{basic_conv_forward.3} parent=43 // pred_fallthru
        _
    $region44: #{basic_conv_forward.3} parent=5 // pred_fallthru
      _
  $region6: #{basic_conv_forward.3} parent=0 // loop_footer
    %s14 = sadd.s32 1, %s10
  $region7: #{basic_conv_forward.3} parent=0 // loop_footer_branch
    %9 = sbr.rel target = $region3
  $region8: #{basic_conv_forward.3} parent=0 // loop_exit
    _

// kernel: basic_conv_forward.2
$region0: #{basic_conv_forward.2}
  #allocation0 [shape = 'u32[]', space=smem, size = 0x4, offset = 0x4, fixed_abs, tag = 'smem constant byte address 0x4 - core index']
  #allocation1 [shape = 'u32[144,128]{1,0:T(1,128)}', space=vmem, size = 0x12000, scoped, tag = 'internal scratch']
  %s0 = inlined_call_operand.vmem [shape: bf16[512,128], index: 0, kind: input, shape index: {}]
  %s1 = inlined_call_operand.vmem [shape: bf16[128,128], index: 1, kind: input, shape index: {}]
  %s2 = inlined_call_operand.vmem [shape: f32[2,128], index: 2, kind: output, shape index: {}]
  %s3 = sld [smem:[#allocation0]]
  $region45: #{basic_conv_forward.2} parent=0
    _
  %s5 = ssub.s32 1, %s3
  %s6 = scalar_select 0, %s5, %s3
  loop: start=0, step=1, limit=6
  $region2: #{basic_conv_forward.2} parent=0 // loop_pre_header
    _
  $region3: #{basic_conv_forward.2} parent=0 // loop_header
    %s8 = sphi 0, %s12
    %p9 = scmp.ge.s32.totalorder %s8, 6
    %s18 = sphi 0, %s20
    %s21 = sphi 0, %s18
    %s22 = sphi 0, %s21
    %s38 = sphi 0, %s22
    %s42 = sphi 0, %s42
    %s44 = sphi 0, %s42
    %s45 = sphi 0, %s44
    %s59 = sphi 0, %s45
    %s63 = sphi 0, %s63
    %s65 = sphi 0, %s63
    %s66 = sphi 0, %s65
    %s80 = sphi 0, %s66
  $region4: #{basic_conv_forward.2} parent=0 // loop_header_branch
    %11 = sbr.rel (%p9) target = $region8
  $region5: #{basic_conv_forward.2} parent=0 // loop_body
    %s13 = ssub.s32 %s8, 1
    %s14 = ssub.s32 %s8, 2
    %s15 = sadd.s32 %s8, 1
    %s16 = ssub.s32 %s8, %s15
    %p17 = scmp.eq.s32.totalorder %s16, 0
    %s19 = sadd.s32 %s18, 1
    %s20 = scalar_select %p17, %s18, %s19
    %p23 = pneg %p17
    %p24 = scmp.eq.s32.totalorder %s8, 3
    %p25 = por %p23, %p24
    %p26 = scmp.ne.s32.totalorder %s18, %s21
    %p27 = scmp.eq.s32.totalorder %s8, 0
    %p28 = por %p26, %p27
    %p29 = scmp.ne.s32.totalorder %s18, %s21
    %p30 = scmp.eq.s32.totalorder %s13, 3
    %p31 = por %p29, %p30
    %p32 = scmp.ne.s32.totalorder %s21, %s22
    %p33 = scmp.eq.s32.totalorder %s13, 0
    %p34 = por %p32, %p33
    %p35 = scmp.ne.s32.totalorder %s21, %s22
    %p36 = scmp.eq.s32.totalorder %s14, 3
    %p37 = por %p35, %p36
    %p39 = scmp.ne.s32.totalorder %s22, %s38
    %p40 = scmp.eq.s32.totalorder %s14, 0
    %p41 = por %p39, %p40
    %s43 = sadd.s32 %s42, 1
    %p46 = scmp.eq.s32.totalorder %s8, 3
    %p47 = scmp.ne.s32.totalorder %s42, %s44
    %p48 = scmp.eq.s32.totalorder %s8, 0
    %p49 = por %p47, %p48
    %p50 = scmp.ne.s32.totalorder %s42, %s44
    %p51 = scmp.eq.s32.totalorder %s13, 3
    %p52 = por %p50, %p51
    %p53 = scmp.ne.s32.totalorder %s44, %s45
    %p54 = scmp.eq.s32.totalorder %s13, 0
    %p55 = por %p53, %p54
    %p56 = scmp.ne.s32.totalorder %s44, %s45
    %p57 = scmp.eq.s32.totalorder %s14, 3
    %p58 = por %p56, %p57
    %p60 = scmp.ne.s32.totalorder %s45, %s59
    %p61 = scmp.eq.s32.totalorder %s14, 0
    %p62 = por %p60, %p61
    %s64 = sadd.s32 %s63, 1
    %p67 = scmp.eq.s32.totalorder %s8, 3
    %p68 = scmp.ne.s32.totalorder %s63, %s65
    %p69 = scmp.eq.s32.totalorder %s8, 0
    %p70 = por %p68, %p69
    %p71 = scmp.ne.s32.totalorder %s63, %s65
    %p72 = scmp.eq.s32.totalorder %s13, 3
    %p73 = por %p71, %p72
    %p74 = scmp.ne.s32.totalorder %s65, %s66
    %p75 = scmp.eq.s32.totalorder %s13, 0
    %p76 = por %p74, %p75
    %p77 = scmp.ne.s32.totalorder %s65, %s66
    %p78 = scmp.eq.s32.totalorder %s14, 3
    %p79 = por %p77, %p78
    %p81 = scmp.ne.s32.totalorder %s66, %s80
    %p82 = scmp.eq.s32.totalorder %s14, 0
    %p83 = por %p81, %p82
    %p84 = scmp.le.s32.totalorder 1, %s8
    %p85 = scmp.lt.s32.totalorder %s8, 5
    %p86 = pnand %p84, %p85
    %p87 = pneg %p86
    // Predicated region
    $region9: #{basic_conv_forward.2} parent=5 // pred_check
      _
    $region10: #{basic_conv_forward.2} parent=5 // pred_check_branch
      %89 = sbr.rel (%p86) target = $region12
    $region11: #{basic_conv_forward.2} parent=5 // pred_region
      %s90 = ssub.s32 %s8, 1
      // Predicated region
      $region13: #{basic_conv_forward.2} parent=11 // pred_check
        %p91 = pneg %p55
      $region14: #{basic_conv_forward.2} parent=11 // pred_check_branch
        %93 = sbr.rel (%p91) target = $region16
      $region15: #{basic_conv_forward.2} parent=11 // pred_region
        _
      $region16: #{basic_conv_forward.2} parent=11 // pred_fallthru
        _
    $region12: #{basic_conv_forward.2} parent=5 // pred_fallthru
      _
    %p94 = scmp.lt.s32.totalorder %s8, 4
    // Predicated region
    $region17: #{basic_conv_forward.2} parent=5 // pred_check
      %p95 = pneg %p94
    $region18: #{basic_conv_forward.2} parent=5 // pred_check_branch
      %97 = sbr.rel (%p95) target = $region20
    $region19: #{basic_conv_forward.2} parent=5 // pred_region
      // Predicated region
      $region21: #{basic_conv_forward.2} parent=19 // pred_check
        %p98 = pneg %p28
      $region22: #{basic_conv_forward.2} parent=19 // pred_check_branch
        %100 = sbr.rel (%p98) target = $region24
      $region23: #{basic_conv_forward.2} parent=19 // pred_region
        %s101 = smul.u32 16, %s8
        %p102 = scmp.lt.s32.totalorder %s101, 63
        %s103 = scalar_select %p102, %s101, 63
        %s104 = smul.addr %s103, 4
        %s105 = scalar_lea.vmem %s0, %s104
        %s106 = smul.u32 16, %s8
      $region24: #{basic_conv_forward.2} parent=19 // pred_fallthru
        _
    $region20: #{basic_conv_forward.2} parent=5 // pred_fallthru
      _
    %p107 = scmp.le.s32.totalorder 1, %s8
    %p108 = scmp.lt.s32.totalorder %s8, 5
    %p109 = pnand %p107, %p108
    %p110 = pneg %p109
    // Predicated region
    $region25: #{basic_conv_forward.2} parent=5 // pred_check
      _
    $region26: #{basic_conv_forward.2} parent=5 // pred_check_branch
      %112 = sbr.rel (%p109) target = $region28
    $region27: #{basic_conv_forward.2} parent=5 // pred_region
      %s113 = ssub.s32 %s8, 1
      %s114 = smul.u32 16, %s13
      %p115 = scmp.lt.s32.totalorder %s114, 63
      %s116 = scalar_select %p115, %s114, 63
      %s117 = smul.addr %s116, 4
      %s118 = scalar_lea.vmem %s0, %s117
      %p119 = pneg %p34
      %p120 = pneg %p31
      %p121 = pneg %p55
      %p122 = pneg %p52
      %p123 = pneg %p76
      %p124 = pneg %p73
      %s125 = smul.u32 16, %s13
      %p126 = scmp.lt.s32.totalorder %s125, 63
      %s127 = scalar_select %p126, %s125, 63
      %s128 = smul.addr %s127, 4
      %s129 = scalar_lea.vmem %s0, %s128
      %s130 = smul.u32 16, %s13
      %p132 = scmp.eq.s32.totalorder %s13, 0
      // Predicated region
      $region29: #{basic_conv_forward.2} parent=27 // pred_check
        %p133 = pneg %p132
      $region30: #{basic_conv_forward.2} parent=27 // pred_check_branch
        %135 = sbr.rel (%p133) target = $region32
      $region31: #{basic_conv_forward.2} parent=27 // pred_region
        %136 = vst [vmem:[%s2] sm:$0x3] 0.0
      $region32: #{basic_conv_forward.2} parent=27 // pred_fallthru
        _
      %v137 = vld [vmem:[%s129] sm:$0xf]
      %v138 = vld [vmem:[%s129 + $0x4] sm:$0xf]
      %v139 = vld [vmem:[%s129 + $0x8] sm:$0xf]
      %v140 = vld [vmem:[%s129 + $0xc] sm:$0xf]
      %v141 = vld [vmem:[%s129 + $0x10] sm:$0xf]
      %v142 = vld [vmem:[%s129 + $0x14] sm:$0xf]
      %v143 = vld [vmem:[%s129 + $0x18] sm:$0xf]
      %v144 = vld [vmem:[%s129 + $0x1c] sm:$0xf]
      %v145 = vld [vmem:[%s129 + $0x20] sm:$0xf]
      %v146 = vld [vmem:[%s129 + $0x24] sm:$0xf]
      %v147 = vld [vmem:[%s129 + $0x28] sm:$0xf]
      %v148 = vld [vmem:[%s129 + $0x2c] sm:$0xf]
      %v149 = vld [vmem:[%s129 + $0x30] sm:$0xf]
      %v150 = vld [vmem:[%s129 + $0x34] sm:$0xf]
      %v151 = vld [vmem:[%s129 + $0x38] sm:$0xf]
      %v152 = vld [vmem:[%s129 + $0x3c] sm:$0xf]
      %v153 = vld [vmem:[%s1] sm:$0xf]
      %v154 = vld [vmem:[%s1 + $0x4] sm:$0xf]
      %v155 = vld [vmem:[%s1 + $0x8] sm:$0xf]
      %v156 = vld [vmem:[%s1 + $0xc] sm:$0xf]
      %v157 = vld [vmem:[%s1 + $0x10] sm:$0xf]
      %v158 = vld [vmem:[%s1 + $0x14] sm:$0xf]
      %v159 = vld [vmem:[%s1 + $0x18] sm:$0xf]
      %v160 = vld [vmem:[%s1 + $0x1c] sm:$0xf]
      %v161 = vld [vmem:[%s1 + $0x20] sm:$0xf]
      %v162 = vld [vmem:[%s1 + $0x24] sm:$0xf]
      %v163 = vld [vmem:[%s1 + $0x28] sm:$0xf]
      %v164 = vld [vmem:[%s1 + $0x2c] sm:$0xf]
      %v165 = vld [vmem:[%s1 + $0x30] sm:$0xf]
      %v166 = vld [vmem:[%s1 + $0x34] sm:$0xf]
      %v167 = vld [vmem:[%s1 + $0x38] sm:$0xf]
      %v168 = vld [vmem:[%s1 + $0x3c] sm:$0xf]
      %v185 = vunpack.c.l.b16 %v137
      %v186 = vunpack.c.l.b16 %v138
      %v187 = vunpack.c.l.b16 %v139
      %v188 = vunpack.c.l.b16 %v140
      %v189 = vunpack.c.l.b16 %v141
      %v190 = vunpack.c.l.b16 %v142
      %v191 = vunpack.c.l.b16 %v143
      %v192 = vunpack.c.l.b16 %v144
      %v193 = vunpack.c.l.b16 %v145
      %v194 = vunpack.c.l.b16 %v146
      %v195 = vunpack.c.l.b16 %v147
      %v196 = vunpack.c.l.b16 %v148
      %v197 = vunpack.c.l.b16 %v149
      %v198 = vunpack.c.l.b16 %v150
      %v199 = vunpack.c.l.b16 %v151
      %v200 = vunpack.c.l.b16 %v152
      %v201 = vpack.c.b16 %v186, %v185
      %v202 = vpack.c.b16 %v188, %v187
      %v203 = vpack.c.b16 %v190, %v189
      %v204 = vpack.c.b16 %v192, %v191
      %v205 = vpack.c.b16 %v194, %v193
      %v206 = vpack.c.b16 %v196, %v195
      %v207 = vpack.c.b16 %v198, %v197
      %v208 = vpack.c.b16 %v200, %v199
      %v233 = vunpack.c.l.b16 %v153
      %v234 = vunpack.c.l.b16 %v154
      %v235 = vunpack.c.l.b16 %v155
      %v236 = vunpack.c.l.b16 %v156
      %v237 = vunpack.c.l.b16 %v157
      %v238 = vunpack.c.l.b16 %v158
      %v239 = vunpack.c.l.b16 %v159
      %v240 = vunpack.c.l.b16 %v160
      %v241 = vunpack.c.l.b16 %v161
      %v242 = vunpack.c.l.b16 %v162
      %v243 = vunpack.c.l.b16 %v163
      %v244 = vunpack.c.l.b16 %v164
      %v245 = vunpack.c.l.b16 %v165
      %v246 = vunpack.c.l.b16 %v166
      %v247 = vunpack.c.l.b16 %v167
      %v248 = vunpack.c.l.b16 %v168
      %v249 = vpack.c.b16 %v234, %v233
      %v250 = vpack.c.b16 %v236, %v235
      %v251 = vpack.c.b16 %v238, %v237
      %v252 = vpack.c.b16 %v240, %v239
      %v253 = vpack.c.b16 %v242, %v241
      %v254 = vpack.c.b16 %v244, %v243
      %v255 = vpack.c.b16 %v246, %v245
      %v256 = vpack.c.b16 %v248, %v247
      %265 = vmatprep.subr.bf16.mxu0 0
      %266 = vmatpush1.bf16.msra.mxu0 %v249
      %267 = vmatprep.subr.bf16.mxu0 0
      %268 = vmatpush1.bf16.msra.mxu0 %v250
      %269 = vmatprep.subr.bf16.mxu0 0
      %270 = vmatpush1.bf16.msra.mxu0 %v251
      %271 = vmatprep.subr.bf16.mxu0 0
      %272 = vmatpush1.bf16.msra.mxu0 %v252
      %273 = vmatprep.subr.bf16.mxu0 0
      %274 = vmatpush1.bf16.msra.mxu0 %v253
      %275 = vmatprep.subr.bf16.mxu0 0
      %276 = vmatpush1.bf16.msra.mxu0 %v254
      %277 = vmatprep.subr.bf16.mxu0 0
      %278 = vmatpush1.bf16.msra.mxu0 %v255
      %279 = vmatprep.subr.bf16.mxu0 0
      %280 = vmatpush1.bf16.msra.mxu0 %v256
      %281 = vmatprep.subr.bf16.mxu0 0
      %282 = vmatpush1.bf16.msra.mxu0 0
      %283 = vmatprep.subr.bf16.mxu0 0
      %284 = vmatpush1.bf16.msra.mxu0 0
      %285 = vmatprep.subr.bf16.mxu0 0
      %286 = vmatpush1.bf16.msra.mxu0 0
      %287 = vmatprep.subr.bf16.mxu0 0
      %288 = vmatpush1.bf16.msra.mxu0 0
      %289 = vmatprep.subr.bf16.mxu0 0
      %290 = vmatpush1.bf16.msra.mxu0 0
      %291 = vmatprep.subr.bf16.mxu0 0
      %292 = vmatpush1.bf16.msra.mxu0 0
      %293 = vmatprep.subr.bf16.mxu0 0
      %294 = vmatpush1.bf16.msra.mxu0 0
      %295 = vmatprep.subr.bf16.mxu0 0
      %296 = vmatpush1.bf16.msra.mxu0 0
      %297 = vmatprep.mubr.bf16.mxu0 0
      %298 = vmatmul.mubr.bf16.gmra.mrb[0].mxu0 %v201
      %v299 = vpop.f32.mrb[0].mxu0
      %v300 = vadd.f32 0.0, %v299
      %v301 = vpop.f32.mrb[0].mxu0
      %v302 = vpop.f32.mrb[0].mxu0
      %v303 = vadd.f32 0.0, %v302
      %v304 = vpop.f32.mrb[0].mxu0
      %305 = vmatprep.mubr.bf16.mxu0 0
      %306 = vmatmul.mubr.bf16.gmra.mrb[0].mxu0 %v202
      %v307 = vpop.f32.mrb[0].mxu0
      %v308 = vadd.f32 0.0, %v307
      %v309 = vpop.f32.mrb[0].mxu0
      %v310 = vpop.f32.mrb[0].mxu0
      %v311 = vadd.f32 0.0, %v310
      %v312 = vpop.f32.mrb[0].mxu0
      %313 = vmatprep.mubr.bf16.mxu0 0
      %314 = vmatmul.mubr.bf16.gmra.mrb[0].mxu0 %v203
      %v315 = vpop.f32.mrb[0].mxu0
      %v316 = vadd.f32 0.0, %v315
      %v317 = vpop.f32.mrb[0].mxu0
      %v318 = vpop.f32.mrb[0].mxu0
      %v319 = vadd.f32 0.0, %v318
      %v320 = vpop.f32.mrb[0].mxu0
      %321 = vmatprep.mubr.bf16.mxu0 0
      %322 = vmatmul.mubr.bf16.gmra.mrb[0].mxu0 %v204
      %v323 = vpop.f32.mrb[0].mxu0
      %v324 = vadd.f32 0.0, %v323
      %v325 = vpop.f32.mrb[0].mxu0
      %v326 = vpop.f32.mrb[0].mxu0
      %v327 = vadd.f32 0.0, %v326
      %v328 = vpop.f32.mrb[0].mxu0
      %329 = vmatprep.mubr.bf16.mxu0 0
      %330 = vmatmul.mubr.bf16.gmra.mrb[0].mxu0 %v205
      %v331 = vpop.f32.mrb[0].mxu0
      %v332 = vadd.f32 0.0, %v331
      %v333 = vpop.f32.mrb[0].mxu0
      %v334 = vpop.f32.mrb[0].mxu0
      %v335 = vadd.f32 0.0, %v334
      %v336 = vpop.f32.mrb[0].mxu0
      %337 = vmatprep.mubr.bf16.mxu0 0
      %338 = vmatmul.mubr.bf16.gmra.mrb[0].mxu0 %v206
      %v339 = vpop.f32.mrb[0].mxu0
      %v340 = vadd.f32 0.0, %v339
      %v341 = vpop.f32.mrb[0].mxu0
      %v342 = vpop.f32.mrb[0].mxu0
      %v343 = vadd.f32 0.0, %v342
      %v344 = vpop.f32.mrb[0].mxu0
      %345 = vmatprep.mubr.bf16.mxu0 0
      %346 = vmatmul.mubr.bf16.gmra.mrb[0].mxu0 %v207
      %v347 = vpop.f32.mrb[0].mxu0
      %v348 = vadd.f32 0.0, %v347
      %v349 = vpop.f32.mrb[0].mxu0
      %v350 = vpop.f32.mrb[0].mxu0
      %v351 = vadd.f32 0.0, %v350
      %v352 = vpop.f32.mrb[0].mxu0
      %353 = vmatprep.mubr.bf16.mxu0 0
      %354 = vmatmul.mubr.bf16.gmra.mrb[0].mxu0 %v208
      %v355 = vpop.f32.mrb[0].mxu0
      %v356 = vadd.f32 0.0, %v355
      %v357 = vpop.f32.mrb[0].mxu0
      %v358 = vpop.f32.mrb[0].mxu0
      %v359 = vadd.f32 0.0, %v358
      %v360 = vpop.f32.mrb[0].mxu0
      %361 = vdwg.mxu0
      %v362 = vadd.f32 %v300, %v303
      %v363 = vadd.f32 %v362, %v308
      %v364 = vadd.f32 %v363, %v311
      %v365 = vadd.f32 %v364, %v316
      %v366 = vadd.f32 %v365, %v319
      %v367 = vadd.f32 %v366, %v324
      %v368 = vadd.f32 %v367, %v327
      %v369 = vadd.f32 %v368, %v332
      %v370 = vadd.f32 %v369, %v335
      %v371 = vadd.f32 %v370, %v340
      %v372 = vadd.f32 %v371, %v343
      %v373 = vadd.f32 %v372, %v348
      %v374 = vadd.f32 %v373, %v351
      %v375 = vadd.f32 %v374, %v356
      %v376 = vadd.f32 %v375, %v359
      %v377 = vrot.slane %v376, 4
      %v378 = vadd.f32 %v376, %v377
      %v379 = vrot.slane %v378, 2
      %v380 = vadd.f32 %v378, %v379
      %v381 = vrot.slane %v380, 1
      %v382 = vadd.f32 %v380, %v381
      %v383 = vmul.f32 %v300, %v300
      %v384 = vmul.f32 %v303, %v303
      %v385 = vmul.f32 %v308, %v308
      %v386 = vmul.f32 %v311, %v311
      %v387 = vmul.f32 %v316, %v316
      %v388 = vmul.f32 %v319, %v319
      %v389 = vmul.f32 %v324, %v324
      %v390 = vmul.f32 %v327, %v327
      %v391 = vmul.f32 %v332, %v332
      %v392 = vmul.f32 %v335, %v335
      %v393 = vmul.f32 %v340, %v340
      %v394 = vmul.f32 %v343, %v343
      %v395 = vmul.f32 %v348, %v348
      %v396 = vmul.f32 %v351, %v351
      %v397 = vmul.f32 %v356, %v356
      %v398 = vmul.f32 %v359, %v359
      %v399 = vadd.f32 %v383, %v384
      %v400 = vadd.f32 %v399, %v385
      %v401 = vadd.f32 %v400, %v386
      %v402 = vadd.f32 %v401, %v387
      %v403 = vadd.f32 %v402, %v388
      %v404 = vadd.f32 %v403, %v389
      %v405 = vadd.f32 %v404, %v390
      %v406 = vadd.f32 %v405, %v391
      %v407 = vadd.f32 %v406, %v392
      %v408 = vadd.f32 %v407, %v393
      %v409 = vadd.f32 %v408, %v394
      %v410 = vadd.f32 %v409, %v395
      %v411 = vadd.f32 %v410, %v396
      %v412 = vadd.f32 %v411, %v397
      %v413 = vadd.f32 %v412, %v398
      %v414 = vrot.slane %v413, 4
      %v415 = vadd.f32 %v413, %v414
      %v416 = vrot.slane %v415, 2
      %v417 = vadd.f32 %v415, %v416
      %v418 = vrot.slane %v417, 1
      %v419 = vadd.f32 %v417, %v418
      %vm420 = vcmask 1040384
      %v421 = vsel %vm420, %v382, %v419
      %v422 = vld [vmem:[%s2] sm:$0x3]
      %v423 = vadd.f32 %v422, %v421
      %424 = vst [vmem:[%s2] sm:$0x3] %v423
      // Predicated region
      $region33: #{basic_conv_forward.2} parent=27 // pred_check
        %p425 = pneg %p73
      $region34: #{basic_conv_forward.2} parent=27 // pred_check_branch
        %427 = sbr.rel (%p425) target = $region36
      $region35: #{basic_conv_forward.2} parent=27 // pred_region
        _
      $region36: #{basic_conv_forward.2} parent=27 // pred_fallthru
        _
      // Predicated region
      $region37: #{basic_conv_forward.2} parent=27 // pred_check
        %p428 = pneg %p73
      $region38: #{basic_conv_forward.2} parent=27 // pred_check_branch
        %430 = sbr.rel (%p428) target = $region40
      $region39: #{basic_conv_forward.2} parent=27 // pred_region
        _
      $region40: #{basic_conv_forward.2} parent=27 // pred_fallthru
        _
    $region28: #{basic_conv_forward.2} parent=5 // pred_fallthru
      _
    %p431 = scmp.le.s32.totalorder 2, %s8
    // Predicated region
    $region41: #{basic_conv_forward.2} parent=5 // pred_check
      %p432 = pneg %p431
    $region42: #{basic_conv_forward.2} parent=5 // pred_check_branch
      %434 = sbr.rel (%p432) target = $region44
    $region43: #{basic_conv_forward.2} parent=5 // pred_region
      %s435 = ssub.s32 %s8, 2
    $region44: #{basic_conv_forward.2} parent=5 // pred_fallthru
      _
  $region6: #{basic_conv_forward.2} parent=0 // loop_footer
    %s12 = sadd.s32 1, %s8
  $region7: #{basic_conv_forward.2} parent=0 // loop_footer_branch
    %7 = sbr.rel target = $region3
  $region8: #{basic_conv_forward.2} parent=0 // loop_exit
    _

</llo_original>
